<compile_context>
chip_gen: v7x
topology: tpu7x:2x2x1
jax: 0.10.0
libtpu: 0.0.40
codegen_flags: <defaults>
</compile_context>

<pallas_src>
import functools
import math

import jax
import jax.numpy as jnp
from jax.experimental import pallas as pl
from jax.experimental.pallas import tpu as pltpu


# ---------------------------------------------------------------------------
# Kernel: one time-chunk of the GRU recurrence per grid step.
# ---------------------------------------------------------------------------
def gru_chunk_kernel(gi_ref, w_hh_ref, b_hn_ref, full_ref, h_ref):
    """Process Tc consecutive GRU timesteps for one batch block.

    gi_ref   : (Tc, Bb, 3*Hp)  precomputed input projection (+ b_ih, b_hr, b_hz)
    w_hh_ref : (Hp, 3*Hp)      hidden-to-hidden weights, gate order r,z,n
    b_hn_ref : (1, Hp)         n-gate hidden bias (must stay inside r*(gh_n+b_hn))
    full_ref : (Tc, Bb, Hp)    hidden-state output for this chunk (time-major)
    h_ref    : (Bb, Hp)        carried hidden state scratch (f32)
    """
    c = pl.program_id(1)                 # time-chunk index (sequential axis)
    tc = gi_ref.shape[0]
    hp = h_ref.shape[-1]

    @pl.when(c == 0)
    def _():
        h_ref[...] = jnp.zeros_like(h_ref)

    w_hh = w_hh_ref[...]                 # constants, loaded once per chunk
    b_hn = b_hn_ref[...].astype(jnp.float32)

    def step(t, h):
        gi = gi_ref[t].astype(jnp.float32)                   # (Bb, 3Hp)
        gh = jnp.dot(h.astype(w_hh.dtype), w_hh,
                     preferred_element_type=jnp.float32)     # (Bb, 3Hp)
        r = jax.nn.sigmoid(gi[:, 0:hp] + gh[:, 0:hp])
        z = jax.nn.sigmoid(gi[:, hp:2 * hp] + gh[:, hp:2 * hp])
        n = jnp.tanh(gi[:, 2 * hp:] + r * (gh[:, 2 * hp:] + b_hn))
        h = n + z * (h - n)                                  # == (1-z)*n + z*h
        full_ref[t] = h.astype(full_ref.dtype)
        return h

    h0 = h_ref[...]
    if tc <= 8:
        # Short chunk: static unroll (LLO sees the whole chain).
        h = h0
        for t in range(tc):
            h = step(t, h)
    else:
        # Longer chunk: fori_loop bounds live ranges, partial unroll for ILP.
        h = jax.lax.fori_loop(0, tc, step, h0, unroll=8)

    h_ref[...] = h


# ---------------------------------------------------------------------------
# Wrapper
# ---------------------------------------------------------------------------
def gru_forward(x, w_ih, w_hh, b_ih, b_hh, *,
                time_chunk=32, batch_block=None,
                matmul_dtype=jnp.bfloat16):
    """Single-layer batch-first GRU forward.

    x    : (B, T, I)
    w_ih : (3H, I), w_hh : (3H, H), b_ih/b_hh : (3H,)   (torch layout, gates r,z,n)
    Returns (full, last) with full: (B, T, H), last: (1, B, H).
    """
    B, T, I = x.shape
    H = w_hh.shape[1]
    out_dtype = x.dtype

    # Lane-pad the hidden dim per gate; sublane-pad the batch.
    Hp = ((H + 127) // 128) * 128
    pad_h = Hp - H
    Bp = ((B + 7) // 8) * 8

    # gi storage dtype: bf16 on the bf16 path halves HBM read + VMEM footprint.
    gi_dtype = jnp.float32 if matmul_dtype == jnp.float32 else jnp.bfloat16

    # ---- batch block selection (>=8 sublanes; split for v7x's 2 cores) ----
    if (batch_block is not None and int(batch_block) % 8 == 0
            and Bp % int(batch_block) == 0):
        Bb = int(batch_block)
    elif Bp >= 16 and (Bp // 2) % 8 == 0:
        Bb = Bp // 2
    else:
        Bb = Bp
    nb = Bp // Bb

    # ---- time-chunk selection, bounded by a ~48 MiB VMEM budget ----
    Tc = max(1, min(int(time_chunk), T))

    def vmem_bytes(tc):
        gi_b = 2 * tc * Bb * 3 * Hp * jnp.dtype(gi_dtype).itemsize      # dbl-buf
        out_b = 2 * tc * Bb * Hp * jnp.dtype(out_dtype).itemsize        # dbl-buf
        w_b = Hp * 3 * Hp * jnp.dtype(matmul_dtype).itemsize            # single
        scr = Bb * Hp * 4
        return gi_b + out_b + w_b + scr + (1 << 20)

    budget = 48 * 1024 * 1024
    while Tc > 1 and vmem_bytes(Tc) > budget:
        Tc = max(1, Tc // 2)
    nc = -(-T // Tc)
    Tn = nc * Tc

    # ---- re-layout + pad weights (gate-major, lane-padded, kernel layout) ----
    # w_ih: (3H, I) -> per-gate (3, Hp, I) -> (I, 3*Hp)  so  x @ w_ih_k == x @ W^T
    w_ih_g = jnp.pad(w_ih.reshape(3, H, I), ((0, 0), (0, pad_h), (0, 0)))
    w_ih_k = jnp.transpose(w_ih_g, (2, 0, 1)).reshape(I, 3 * Hp)
    # w_hh: (3H, H) -> per-gate (3, Hp_out, Hp_in) -> (Hp_in, 3*Hp_out)
    w_hh_g = jnp.pad(w_hh.reshape(3, H, H), ((0, 0), (0, pad_h), (0, pad_h)))
    w_hh_k = jnp.transpose(w_hh_g, (2, 0, 1)).reshape(Hp, 3 * Hp)

    # Bias folding: b_ih (all gates) + b_hh r/z halves go into gi; b_hn stays
    # in-kernel (torch computes n = tanh(gi_n + r*(gh_n + b_hn))).
    b_ih_g = jnp.pad(b_ih.reshape(3, H), ((0, 0), (0, pad_h)))      # (3, Hp)
    b_hh_g = jnp.pad(b_hh.reshape(3, H), ((0, 0), (0, pad_h)))
    b_fold = jnp.concatenate([b_ih_g[0] + b_hh_g[0],
                              b_ih_g[1] + b_hh_g[1],
                              b_ih_g[2]]).reshape(1, 3 * Hp).astype(jnp.float32)
    b_hn = b_hh_g[2].reshape(1, Hp).astype(jnp.float32)

    # ---- hoisted input projection: transpose x FIRST (cheap), one matmul ----
    x_t = jnp.transpose(x, (1, 0, 2))                                # (T, B, I)
    if Bp != B:
        x_t = jnp.pad(x_t, ((0, 0), (0, Bp - B), (0, 0)))
    gi = jnp.dot(x_t.reshape(T * Bp, I).astype(matmul_dtype),
                 w_ih_k.astype(matmul_dtype),
                 preferred_element_type=jnp.float32)
    gi = (gi + b_fold).reshape(T, Bp, 3 * Hp).astype(gi_dtype)       # time-major
    if Tn != T:
        # Padded timesteps run real compute on zero-gi; the resulting bogus h
        # in the carry scratch is never read back.
        gi = jnp.pad(gi, ((0, Tn - T), (0, 0), (0, 0)))

    vmem_limit = int(min(max(2 * vmem_bytes(Tc), 32 << 20), 64 << 20))

    full_tbh = pl.pallas_call(
        gru_chunk_kernel,
        out_shape=jax.ShapeDtypeStruct((Tn, Bp, Hp), out_dtype),
        grid_spec=pltpu.PrefetchScalarGridSpec(
            num_scalar_prefetch=0,
            grid=(nb, nc),
            in_specs=[
                pl.BlockSpec((Tc, Bb, 3 * Hp), lambda b, c: (c, b, 0)),
                # Constant index_map -> single-buffer the stationary operands.
                pl.BlockSpec((Hp, 3 * Hp), lambda b, c: (0, 0),
                             pipeline_mode=pl.Buffered(1)),
                pl.BlockSpec((1, Hp), lambda b, c: (0, 0),
                             pipeline_mode=pl.Buffered(1)),
            ],
            out_specs=pl.BlockSpec((Tc, Bb, Hp), lambda b, c: (c, b, 0)),
            scratch_shapes=[pltpu.VMEM((Bb, Hp), jnp.float32)],
        ),
        compiler_params=pltpu.CompilerParams(
            dimension_semantics=("parallel", "arbitrary"),
            vmem_limit_bytes=vmem_limit),
    )(gi, w_hh_k.astype(matmul_dtype), b_hn)

    # Conditional no-op slice; the time-major -> batch-major transpose is the
    # only unavoidable post-pass (module contract requires batch_first output).
    if (Tn, Bp, Hp) != (T, B, H):
        full_tbh = full_tbh[:T, :B, :H]
    full = jnp.transpose(full_tbh, (1, 0, 2))                        # (B, T, H)
    last = full[:, T - 1, :][None]                                   # (1, B, H)
    return full, last


# ---------------------------------------------------------------------------
# Parameter init (mimics the module's reset_parameters) + pure-JAX reference
# ---------------------------------------------------------------------------
def init_gru_params(key, input_size, hidden_size):
    k1, k2, k3, k4 = jax.random.split(key, 4)
    H3 = 3 * hidden_size

    def xavier_normal(k, shape):
        fan_out, fan_in = shape
        std = math.sqrt(2.0 / (fan_in + fan_out))
        return std * jax.random.normal(k, shape, dtype=jnp.float32)

    def uniform_bias(k, n):
        std = 1.0 / math.sqrt(n)
        return jax.random.uniform(k, (n,), dtype=jnp.float32, minval=-std, maxval=std)

    w_ih = xavier_normal(k1, (H3, input_size))
    w_hh = xavier_normal(k2, (H3, hidden_size))
    b_ih = uniform_bias(k3, H3)
    b_hh = uniform_bias(k4, H3)
    return w_ih, w_hh, b_ih, b_hh


def gru_reference(x, w_ih, w_hh, b_ih, b_hh):
    """Pure-JAX reference (same math as torch.nn.GRU), f32 throughout."""
    B, T, I = x.shape
    H = w_hh.shape[1]

    def step(h, x_t):
        gi = x_t @ w_ih.T + b_ih
        gh = h @ w_hh.T + b_hh
        r = jax.nn.sigmoid(gi[:, 0:H] + gh[:, 0:H])
        z = jax.nn.sigmoid(gi[:, H:2 * H] + gh[:, H:2 * H])
        n = jnp.tanh(gi[:, 2 * H:] + r * gh[:, 2 * H:])
        h_new = (1.0 - z) * n + z * h
        return h_new, h_new

    h0 = jnp.zeros((B, H), dtype=x.dtype)
    last, full = jax.lax.scan(step, h0, jnp.transpose(x, (1, 0, 2)))
    return jnp.transpose(full, (1, 0, 2)), last[None]


# ---------------------------------------------------------------------------
if __name__ == "__main__":
    key = jax.random.PRNGKey(0)

    # --- Test 1 & 2: module-like small shapes (B=2, T=8, I=4, H=32) ---
    B, T, I, H = 2, 8, 4, 32
    k_x, k_p, k_x2 = jax.random.split(key, 3)
    x = jax.random.normal(k_x, (B, T, I), dtype=jnp.float32)
    w_ih, w_hh, b_ih, b_hh = init_gru_params(k_p, I, H)

    full_ref, last_ref = gru_reference(x, w_ih, w_hh, b_ih, b_hh)

    # bf16 (performance) path: time_chunk=4 so h carries across grid steps.
    fwd_bf16 = jax.jit(functools.partial(
        gru_forward, time_chunk=4, matmul_dtype=jnp.bfloat16))
    full, last = fwd_bf16(x, w_ih, w_hh, b_ih, b_hh)
    jax.block_until_ready((full, last))
    assert full.shape == (B, T, H) and last.shape == (1, B, H)
    assert jnp.allclose(full, full_ref, atol=3e-2, rtol=3e-2)
    assert jnp.allclose(last, last_ref, atol=3e-2, rtol=3e-2)

    # f32 path: tight structural check.
    fwd_f32 = jax.jit(functools.partial(
        gru_forward, time_chunk=4, matmul_dtype=jnp.float32))
    full32, last32 = fwd_f32(x, w_ih, w_hh, b_ih, b_hh)
    jax.block_until_ready((full32, last32))
    assert jnp.allclose(full32, full_ref, atol=1e-3, rtol=1e-3)
    assert jnp.allclose(last32, last_ref, atol=1e-3, rtol=1e-3)

    # --- Test 3: larger batch/seq exercising fori_loop chunk + 2 batch blocks ---
    B2, T2 = 16, 32
    x2 = jax.random.normal(k_x2, (B2, T2, I), dtype=jnp.float32)
    full_ref2, last_ref2 = gru_reference(x2, w_ih, w_hh, b_ih, b_hh)

    fwd_big = jax.jit(functools.partial(
        gru_forward, time_chunk=32, matmul_dtype=jnp.float32))
    full2, last2 = fwd_big(x2, w_ih, w_hh, b_ih, b_hh)
    jax.block_until_ready((full2, last2))
    assert full2.shape == (B2, T2, H) and last2.shape == (1, B2, H)
    assert jnp.allclose(full2, full_ref2, atol=1e-2, rtol=1e-2)
    assert jnp.allclose(last2, last_ref2, atol=1e-2, rtol=1e-2)

    print("KERNEL_OK")
</pallas_src>

<mosaic_0001>
module attributes {stable_mosaic.version = 11 : i64} {
  func.func @gru_chunk_kernel(%arg0: i32, %arg1: i32, %arg2: memref<4x8x384xbf16, #tpu.memory_space<vmem>>, %arg3: memref<128x384xbf16, #tpu.memory_space<vmem>>, %arg4: memref<1x128xf32, #tpu.memory_space<vmem>>, %arg5: memref<4x8x128xf32, #tpu.memory_space<vmem>>, %arg6: memref<8x128xf32, #tpu.memory_space<vmem>>) attributes {dimension_semantics = [#tpu.dimension_semantics<parallel>, #tpu.dimension_semantics<arbitrary>], iteration_bounds = array<i64: 1, 2>, scalar_prefetch = 0 : i64, scratch_operands = 1 : i64, tpu.core_type = #tpu.core_type<tc>, window_params = [{transform_indices = @transform_0, window_bounds = array<i64: 4, 8, 384>}, {pipeline_mode = #tpu.pipeline_mode<synchronous>, transform_indices = @transform_1, window_bounds = array<i64: 128, 384>}, {pipeline_mode = #tpu.pipeline_mode<synchronous>, transform_indices = @transform_2, window_bounds = array<i64: 1, 128>}, {transform_indices = @transform_3, window_bounds = array<i64: 4, 8, 128>}]} {
    %c0_i32 = arith.constant 0 : i32
    %0 = arith.cmpi eq, %arg1, %c0_i32 : i32
    %1 = arith.extui %0 : i1 to i32
    %c0_i32_0 = arith.constant 0 : i32
    %2 = arith.cmpi ne, %1, %c0_i32_0 : i32
    scf.if %2 {
      %cst_40 = arith.constant 0.000000e+00 : f32
      %143 = vector.broadcast %cst_40 : f32 to vector<8x128xf32>
      %c0_41 = arith.constant 0 : index
      %c0_42 = arith.constant 0 : index
      %144 = vector.load %arg6[%c0_41, %c0_42] : memref<8x128xf32, #tpu.memory_space<vmem>>, vector<8x128xf32>
      tpu.vector_store %arg6[%c0_41, %c0_42], %143 {strides = array<i32>} : memref<8x128xf32, #tpu.memory_space<vmem>>, vector<8x128xf32>,
    } else {
    }
    %c0 = arith.constant 0 : index
    %c0_1 = arith.constant 0 : index
    %3 = vector.load %arg3[%c0, %c0_1] : memref<128x384xbf16, #tpu.memory_space<vmem>>, vector<128x384xbf16>
    %c0_2 = arith.constant 0 : index
    %c0_3 = arith.constant 0 : index
    %4 = vector.load %arg4[%c0_2, %c0_3] : memref<1x128xf32, #tpu.memory_space<vmem>>, vector<1x128xf32>
    %c0_4 = arith.constant 0 : index
    %c0_5 = arith.constant 0 : index
    %5 = vector.load %arg6[%c0_4, %c0_5] : memref<8x128xf32, #tpu.memory_space<vmem>>, vector<8x128xf32>
    %c0_6 = arith.constant 0 : index
    %c0_7 = arith.constant 0 : index
    %c0_8 = arith.constant 0 : index
    %6 = vector.load %arg2[%c0_6, %c0_7, %c0_8] : memref<4x8x384xbf16, #tpu.memory_space<vmem>>, vector<1x8x384xbf16>
    %7 = vector.shape_cast %6 : vector<1x8x384xbf16> to vector<8x384xbf16>
    %8 = arith.extf %7 : vector<8x384xbf16> to vector<8x384xf32>
    %9 = arith.truncf %5 : vector<8x128xf32> to vector<8x128xbf16>
    %cst = arith.constant dense<0.000000e+00> : vector<8x384xf32>
    %10 = tpu.matmul %9, %3, %cst {dimension_numbers = #tpu.dot_dimension_numbers<[1], [0], [0], [1], [0, 0, 1, 1], [], []>} : vector<8x128xbf16>, vector<128x384xbf16>, vector<8x384xf32> -> vector<8x384xf32>
    %11 = vector.extract_strided_slice %8 {offsets = [0, 0], sizes = [8, 128], strides = [1, 1]} : vector<8x384xf32> to vector<8x128xf32>
    %12 = vector.extract_strided_slice %10 {offsets = [0, 0], sizes = [8, 128], strides = [1, 1]} : vector<8x384xf32> to vector<8x128xf32>
    %13 = arith.addf %11, %12 : vector<8x128xf32>
    %14 = arith.negf %13 : vector<8x128xf32>
    %15 = math.exp %14 : vector<8x128xf32>
    %cst_9 = arith.constant 1.000000e+00 : f32
    %16 = vector.broadcast %cst_9 : f32 to vector<8x128xf32>
    %17 = arith.addf %16, %15 : vector<8x128xf32>
    %18 = arith.divf %16, %17 : vector<8x128xf32>
    %19 = vector.extract_strided_slice %8 {offsets = [0, 128], sizes = [8, 128], strides = [1, 1]} : vector<8x384xf32> to vector<8x128xf32>
    %20 = vector.extract_strided_slice %10 {offsets = [0, 128], sizes = [8, 128], strides = [1, 1]} : vector<8x384xf32> to vector<8x128xf32>
    %21 = arith.addf %19, %20 : vector<8x128xf32>
    %22 = arith.negf %21 : vector<8x128xf32>
    %23 = math.exp %22 : vector<8x128xf32>
    %cst_10 = arith.constant 1.000000e+00 : f32
    %24 = vector.broadcast %cst_10 : f32 to vector<8x128xf32>
    %25 = arith.addf %24, %23 : vector<8x128xf32>
    %26 = arith.divf %24, %25 : vector<8x128xf32>
    %27 = vector.extract_strided_slice %8 {offsets = [0, 256], sizes = [8, 128], strides = [1, 1]} : vector<8x384xf32> to vector<8x128xf32>
    %28 = vector.extract_strided_slice %10 {offsets = [0, 256], sizes = [8, 128], strides = [1, 1]} : vector<8x384xf32> to vector<8x128xf32>
    %29 = vector.broadcast %4 : vector<1x128xf32> to vector<8x128xf32>
    %30 = arith.addf %28, %29 : vector<8x128xf32>
    %31 = arith.mulf %18, %30 : vector<8x128xf32>
    %32 = arith.addf %27, %31 : vector<8x128xf32>
    %33 = math.tanh %32 : vector<8x128xf32>
    %34 = arith.subf %5, %33 : vector<8x128xf32>
    %35 = arith.mulf %26, %34 : vector<8x128xf32>
    %36 = arith.addf %33, %35 : vector<8x128xf32>
    %c0_11 = arith.constant 0 : index
    %c0_12 = arith.constant 0 : index
    %c0_13 = arith.constant 0 : index
    %37 = vector.load %arg5[%c0_11, %c0_12, %c0_13] : memref<4x8x128xf32, #tpu.memory_space<vmem>>, vector<1x8x128xf32>
    %38 = vector.shape_cast %37 : vector<1x8x128xf32> to vector<8x128xf32>
    %39 = vector.shape_cast %36 : vector<8x128xf32> to vector<1x8x128xf32>
    tpu.vector_store %arg5[%c0_11, %c0_12, %c0_13], %39 {strides = array<i32>} : memref<4x8x128xf32, #tpu.memory_space<vmem>>, vector<1x8x128xf32>,
    %c1 = arith.constant 1 : index
    %c0_14 = arith.constant 0 : index
    %c0_15 = arith.constant 0 : index
    %40 = vector.load %arg2[%c1, %c0_14, %c0_15] : memref<4x8x384xbf16, #tpu.memory_space<vmem>>, vector<1x8x384xbf16>
    %41 = vector.shape_cast %40 : vector<1x8x384xbf16> to vector<8x384xbf16>
    %42 = arith.extf %41 : vector<8x384xbf16> to vector<8x384xf32>
    %43 = arith.truncf %36 : vector<8x128xf32> to vector<8x128xbf16>
    %cst_16 = arith.constant dense<0.000000e+00> : vector<8x384xf32>
    %44 = tpu.matmul %43, %3, %cst_16 {dimension_numbers = #tpu.dot_dimension_numbers<[1], [0], [0], [1], [0, 0, 1, 1], [], []>} : vector<8x128xbf16>, vector<128x384xbf16>, vector<8x384xf32> -> vector<8x384xf32>
    %45 = vector.extract_strided_slice %42 {offsets = [0, 0], sizes = [8, 128], strides = [1, 1]} : vector<8x384xf32> to vector<8x128xf32>
    %46 = vector.extract_strided_slice %44 {offsets = [0, 0], sizes = [8, 128], strides = [1, 1]} : vector<8x384xf32> to vector<8x128xf32>
    %47 = arith.addf %45, %46 : vector<8x128xf32>
    %48 = arith.negf %47 : vector<8x128xf32>
    %49 = math.exp %48 : vector<8x128xf32>
    %cst_17 = arith.constant 1.000000e+00 : f32
    %50 = vector.broadcast %cst_17 : f32 to vector<8x128xf32>
    %51 = arith.addf %50, %49 : vector<8x128xf32>
    %52 = arith.divf %50, %51 : vector<8x128xf32>
    %53 = vector.extract_strided_slice %42 {offsets = [0, 128], sizes = [8, 128], strides = [1, 1]} : vector<8x384xf32> to vector<8x128xf32>
    %54 = vector.extract_strided_slice %44 {offsets = [0, 128], sizes = [8, 128], strides = [1, 1]} : vector<8x384xf32> to vector<8x128xf32>
    %55 = arith.addf %53, %54 : vector<8x128xf32>
    %56 = arith.negf %55 : vector<8x128xf32>
    %57 = math.exp %56 : vector<8x128xf32>
    %cst_18 = arith.constant 1.000000e+00 : f32
    %58 = vector.broadcast %cst_18 : f32 to vector<8x128xf32>
    %59 = arith.addf %58, %57 : vector<8x128xf32>
    %60 = arith.divf %58, %59 : vector<8x128xf32>
    %61 = vector.extract_strided_slice %42 {offsets = [0, 256], sizes = [8, 128], strides = [1, 1]} : vector<8x384xf32> to vector<8x128xf32>
    %62 = vector.extract_strided_slice %44 {offsets = [0, 256], sizes = [8, 128], strides = [1, 1]} : vector<8x384xf32> to vector<8x128xf32>
    %63 = vector.broadcast %4 : vector<1x128xf32> to vector<8x128xf32>
    %64 = arith.addf %62, %63 : vector<8x128xf32>
    %65 = arith.mulf %52, %64 : vector<8x128xf32>
    %66 = arith.addf %61, %65 : vector<8x128xf32>
    %67 = math.tanh %66 : vector<8x128xf32>
    %68 = arith.subf %36, %67 : vector<8x128xf32>
    %69 = arith.mulf %60, %68 : vector<8x128xf32>
    %70 = arith.addf %67, %69 : vector<8x128xf32>
    %c1_19 = arith.constant 1 : index
    %c0_20 = arith.constant 0 : index
    %c0_21 = arith.constant 0 : index
    %71 = vector.load %arg5[%c1_19, %c0_20, %c0_21] : memref<4x8x128xf32, #tpu.memory_space<vmem>>, vector<1x8x128xf32>
    %72 = vector.shape_cast %71 : vector<1x8x128xf32> to vector<8x128xf32>
    %73 = vector.shape_cast %70 : vector<8x128xf32> to vector<1x8x128xf32>
    tpu.vector_store %arg5[%c1_19, %c0_20, %c0_21], %73 {strides = array<i32>} : memref<4x8x128xf32, #tpu.memory_space<vmem>>, vector<1x8x128xf32>,
    %c2 = arith.constant 2 : index
    %c0_22 = arith.constant 0 : index
    %c0_23 = arith.constant 0 : index
    %74 = vector.load %arg2[%c2, %c0_22, %c0_23] : memref<4x8x384xbf16, #tpu.memory_space<vmem>>, vector<1x8x384xbf16>
    %75 = vector.shape_cast %74 : vector<1x8x384xbf16> to vector<8x384xbf16>
    %76 = arith.extf %75 : vector<8x384xbf16> to vector<8x384xf32>
    %77 = arith.truncf %70 : vector<8x128xf32> to vector<8x128xbf16>
    %cst_24 = arith.constant dense<0.000000e+00> : vector<8x384xf32>
    %78 = tpu.matmul %77, %3, %cst_24 {dimension_numbers = #tpu.dot_dimension_numbers<[1], [0], [0], [1], [0, 0, 1, 1], [], []>} : vector<8x128xbf16>, vector<128x384xbf16>, vector<8x384xf32> -> vector<8x384xf32>
    %79 = vector.extract_strided_slice %76 {offsets = [0, 0], sizes = [8, 128], strides = [1, 1]} : vector<8x384xf32> to vector<8x128xf32>
    %80 = vector.extract_strided_slice %78 {offsets = [0, 0], sizes = [8, 128], strides = [1, 1]} : vector<8x384xf32> to vector<8x128xf32>
    %81 = arith.addf %79, %80 : vector<8x128xf32>
    %82 = arith.negf %81 : vector<8x128xf32>
    %83 = math.exp %82 : vector<8x128xf32>
    %cst_25 = arith.constant 1.000000e+00 : f32
    %84 = vector.broadcast %cst_25 : f32 to vector<8x128xf32>
    %85 = arith.addf %84, %83 : vector<8x128xf32>
    %86 = arith.divf %84, %85 : vector<8x128xf32>
    %87 = vector.extract_strided_slice %76 {offsets = [0, 128], sizes = [8, 128], strides = [1, 1]} : vector<8x384xf32> to vector<8x128xf32>
    %88 = vector.extract_strided_slice %78 {offsets = [0, 128], sizes = [8, 128], strides = [1, 1]} : vector<8x384xf32> to vector<8x128xf32>
    %89 = arith.addf %87, %88 : vector<8x128xf32>
    %90 = arith.negf %89 : vector<8x128xf32>
    %91 = math.exp %90 : vector<8x128xf32>
    %cst_26 = arith.constant 1.000000e+00 : f32
    %92 = vector.broadcast %cst_26 : f32 to vector<8x128xf32>
    %93 = arith.addf %92, %91 : vector<8x128xf32>
    %94 = arith.divf %92, %93 : vector<8x128xf32>
    %95 = vector.extract_strided_slice %76 {offsets = [0, 256], sizes = [8, 128], strides = [1, 1]} : vector<8x384xf32> to vector<8x128xf32>
    %96 = vector.extract_strided_slice %78 {offsets = [0, 256], sizes = [8, 128], strides = [1, 1]} : vector<8x384xf32> to vector<8x128xf32>
    %97 = vector.broadcast %4 : vector<1x128xf32> to vector<8x128xf32>
    %98 = arith.addf %96, %97 : vector<8x128xf32>
    %99 = arith.mulf %86, %98 : vector<8x128xf32>
    %100 = arith.addf %95, %99 : vector<8x128xf32>
    %101 = math.tanh %100 : vector<8x128xf32>
    %102 = arith.subf %70, %101 : vector<8x128xf32>
    %103 = arith.mulf %94, %102 : vector<8x128xf32>
    %104 = arith.addf %101, %103 : vector<8x128xf32>
    %c2_27 = arith.constant 2 : index
    %c0_28 = arith.constant 0 : index
    %c0_29 = arith.constant 0 : index
    %105 = vector.load %arg5[%c2_27, %c0_28, %c0_29] : memref<4x8x128xf32, #tpu.memory_space<vmem>>, vector<1x8x128xf32>
    %106 = vector.shape_cast %105 : vector<1x8x128xf32> to vector<8x128xf32>
    %107 = vector.shape_cast %104 : vector<8x128xf32> to vector<1x8x128xf32>
    tpu.vector_store %arg5[%c2_27, %c0_28, %c0_29], %107 {strides = array<i32>} : memref<4x8x128xf32, #tpu.memory_space<vmem>>, vector<1x8x128xf32>,
    %c3 = arith.constant 3 : index
    %c0_30 = arith.constant 0 : index
    %c0_31 = arith.constant 0 : index
    %108 = vector.load %arg2[%c3, %c0_30, %c0_31] : memref<4x8x384xbf16, #tpu.memory_space<vmem>>, vector<1x8x384xbf16>
    %109 = vector.shape_cast %108 : vector<1x8x384xbf16> to vector<8x384xbf16>
    %110 = arith.extf %109 : vector<8x384xbf16> to vector<8x384xf32>
    %111 = arith.truncf %104 : vector<8x128xf32> to vector<8x128xbf16>
    %cst_32 = arith.constant dense<0.000000e+00> : vector<8x384xf32>
    %112 = tpu.matmul %111, %3, %cst_32 {dimension_numbers = #tpu.dot_dimension_numbers<[1], [0], [0], [1], [0, 0, 1, 1], [], []>} : vector<8x128xbf16>, vector<128x384xbf16>, vector<8x384xf32> -> vector<8x384xf32>
    %113 = vector.extract_strided_slice %110 {offsets = [0, 0], sizes = [8, 128], strides = [1, 1]} : vector<8x384xf32> to vector<8x128xf32>
    %114 = vector.extract_strided_slice %112 {offsets = [0, 0], sizes = [8, 128], strides = [1, 1]} : vector<8x384xf32> to vector<8x128xf32>
    %115 = arith.addf %113, %114 : vector<8x128xf32>
    %116 = arith.negf %115 : vector<8x128xf32>
    %117 = math.exp %116 : vector<8x128xf32>
    %cst_33 = arith.constant 1.000000e+00 : f32
    %118 = vector.broadcast %cst_33 : f32 to vector<8x128xf32>
    %119 = arith.addf %118, %117 : vector<8x128xf32>
    %120 = arith.divf %118, %119 : vector<8x128xf32>
    %121 = vector.extract_strided_slice %110 {offsets = [0, 128], sizes = [8, 128], strides = [1, 1]} : vector<8x384xf32> to vector<8x128xf32>
    %122 = vector.extract_strided_slice %112 {offsets = [0, 128], sizes = [8, 128], strides = [1, 1]} : vector<8x384xf32> to vector<8x128xf32>
    %123 = arith.addf %121, %122 : vector<8x128xf32>
    %124 = arith.negf %123 : vector<8x128xf32>
    %125 = math.exp %124 : vector<8x128xf32>
    %cst_34 = arith.constant 1.000000e+00 : f32
    %126 = vector.broadcast %cst_34 : f32 to vector<8x128xf32>
    %127 = arith.addf %126, %125 : vector<8x128xf32>
    %128 = arith.divf %126, %127 : vector<8x128xf32>
    %129 = vector.extract_strided_slice %110 {offsets = [0, 256], sizes = [8, 128], strides = [1, 1]} : vector<8x384xf32> to vector<8x128xf32>
    %130 = vector.extract_strided_slice %112 {offsets = [0, 256], sizes = [8, 128], strides = [1, 1]} : vector<8x384xf32> to vector<8x128xf32>
    %131 = vector.broadcast %4 : vector<1x128xf32> to vector<8x128xf32>
    %132 = arith.addf %130, %131 : vector<8x128xf32>
    %133 = arith.mulf %120, %132 : vector<8x128xf32>
    %134 = arith.addf %129, %133 : vector<8x128xf32>
    %135 = math.tanh %134 : vector<8x128xf32>
    %136 = arith.subf %104, %135 : vector<8x128xf32>
    %137 = arith.mulf %128, %136 : vector<8x128xf32>
    %138 = arith.addf %135, %137 : vector<8x128xf32>
    %c3_35 = arith.constant 3 : index
    %c0_36 = arith.constant 0 : index
    %c0_37 = arith.constant 0 : index
    %139 = vector.load %arg5[%c3_35, %c0_36, %c0_37] : memref<4x8x128xf32, #tpu.memory_space<vmem>>, vector<1x8x128xf32>
    %140 = vector.shape_cast %139 : vector<1x8x128xf32> to vector<8x128xf32>
    %141 = vector.shape_cast %138 : vector<8x128xf32> to vector<1x8x128xf32>
    tpu.vector_store %arg5[%c3_35, %c0_36, %c0_37], %141 {strides = array<i32>} : memref<4x8x128xf32, #tpu.memory_space<vmem>>, vector<1x8x128xf32>,
    %c0_38 = arith.constant 0 : index
    %c0_39 = arith.constant 0 : index
    %142 = vector.load %arg6[%c0_38, %c0_39] : memref<8x128xf32, #tpu.memory_space<vmem>>, vector<8x128xf32>
    tpu.vector_store %arg6[%c0_38, %c0_39], %138 {strides = array<i32>} : memref<8x128xf32, #tpu.memory_space<vmem>>, vector<8x128xf32>,
    return
  }
  func.func @transform_0(%arg0: i32, %arg1: i32) -> (i32, i32, i32) {
    %c0_i32 = arith.constant 0 : i32
    %c0_i32_0 = arith.constant 0 : i32
    return %arg1, %arg0, %c0_i32 : i32, i32, i32
  }
  func.func @transform_1(%arg0: i32, %arg1: i32) -> (i32, i32) {
    %c0_i32 = arith.constant 0 : i32
    %c0_i32_0 = arith.constant 0 : i32
    %c0_i32_1 = arith.constant 0 : i32
    return %c0_i32, %c0_i32_0 : i32, i32
  }
  func.func @transform_2(%arg0: i32, %arg1: i32) -> (i32, i32) {
    %c0_i32 = arith.constant 0 : i32
    %c0_i32_0 = arith.constant 0 : i32
    %c0_i32_1 = arith.constant 0 : i32
    return %c0_i32, %c0_i32_0 : i32, i32
  }
  func.func @transform_3(%arg0: i32, %arg1: i32) -> (i32, i32, i32) {
    %c0_i32 = arith.constant 0 : i32
    %c0_i32_0 = arith.constant 0 : i32
    return %arg1, %arg0, %c0_i32 : i32, i32, i32
  }
}

</mosaic_0001>

<llo_original>
// kernel: gru_forward.1
$region0: #{gru_forward.1}
  #allocation0 [shape = 'u32[]', space=smem, size = 0x4, offset = 0x4, fixed_abs, tag = 'smem constant byte address 0x4 - core index']
  #allocation1 [shape = 'u32[144,128]{1,0:T(1,128)}', space=vmem, size = 0x12000, scoped, tag = 'internal scratch']
  #allocation2 [shape = 'f32[8,128]{1,0:T(8,128)}', space=vmem, size = 0x1000, scoped, tag = 'scratch operand']
  %s0 = inlined_call_operand.vmem [shape: bf16[8,8,384], index: 0, kind: input, shape index: {}]
  %s1 = inlined_call_operand.vmem [shape: bf16[128,384], index: 1, kind: input, shape index: {}]
  %s2 = inlined_call_operand.vmem [shape: f32[1,128], index: 2, kind: input, shape index: {}]
  %s3 = inlined_call_operand.vmem [shape: f32[8,8,128], index: 3, kind: output, shape index: {}]
  %s4 = sld [smem:[#allocation0]]
  $region49: #{gru_forward.1} parent=0
    _
  %s6 = ssub.s32 1, %s4
  %s7 = scalar_select 0, %s6, %s4
  loop: start=0, step=1, limit=4
  $region2: #{gru_forward.1} parent=0 // loop_pre_header
    _
  $region3: #{gru_forward.1} parent=0 // loop_header
    %s9 = sphi 0, %s13
    %p10 = scmp.ge.s32.totalorder %s9, 4
    %s16 = sphi 0, %s28
    %s17 = sphi 0, %s24
    %s18 = sphi 0, %s16
    %s19 = sphi 0, %s17
    %s20 = sphi 0, %s18
    %s21 = sphi 0, %s19
    %s33 = sphi 0, %s35
    %s36 = sphi 0, %s33
    %s37 = sphi 0, %s36
    %s53 = sphi 0, %s37
    %s57 = sphi 0, %s57
    %s59 = sphi 0, %s57
    %s60 = sphi 0, %s59
    %s74 = sphi 0, %s60
    %s78 = sphi 0, %s78
    %s80 = sphi 0, %s78
    %s81 = sphi 0, %s80
    %s95 = sphi 0, %s81
    %s103 = sphi 0, %s105
    %s106 = sphi 0, %s103
    %s107 = sphi 0, %s106
    %s123 = sphi 0, %s107
  $region4: #{gru_forward.1} parent=0 // loop_header_branch
    %12 = sbr.rel (%p10) target = $region8
  $region5: #{gru_forward.1} parent=0 // loop_body
    %s14 = ssub.s32 %s9, 1
    %s15 = ssub.s32 %s9, 2
    %s22 = sadd.s32 1, %s17
    %p23 = scmp.ge.s32.totalorder %s22, 2
    %s24 = scalar_select %p23, 0, %s22
    %s25 = sadd.s32 1, %s16
    %s26 = scalar_select %p23, %s25, %s16
    %p27 = scmp.ge.s32.totalorder %s26, 1
    %s28 = scalar_select %p27, 0, %s26
    %s29 = ssub.s32 %s17, %s24
    %s30 = ssub.s32 %s16, %s28
    %s31 = sor.u32 %s29, %s30
    %p32 = scmp.eq.s32.totalorder %s31, 0
    %s34 = sadd.s32 %s33, 1
    %s35 = scalar_select %p32, %s33, %s34
    %p38 = pneg %p32
    %p39 = scmp.eq.s32.totalorder %s9, 1
    %p40 = por %p38, %p39
    %p41 = scmp.ne.s32.totalorder %s33, %s36
    %p42 = scmp.eq.s32.totalorder %s9, 0
    %p43 = por %p41, %p42
    %p44 = scmp.ne.s32.totalorder %s33, %s36
    %p45 = scmp.eq.s32.totalorder %s14, 1
    %p46 = por %p44, %p45
    %p47 = scmp.ne.s32.totalorder %s36, %s37
    %p48 = scmp.eq.s32.totalorder %s14, 0
    %p49 = por %p47, %p48
    %p50 = scmp.ne.s32.totalorder %s36, %s37
    %p51 = scmp.eq.s32.totalorder %s15, 1
    %p52 = por %p50, %p51
    %p54 = scmp.ne.s32.totalorder %s37, %s53
    %p55 = scmp.eq.s32.totalorder %s15, 0
    %p56 = por %p54, %p55
    %s58 = sadd.s32 %s57, 1
    %p61 = scmp.eq.s32.totalorder %s9, 1
    %p62 = scmp.ne.s32.totalorder %s57, %s59
    %p63 = scmp.eq.s32.totalorder %s9, 0
    %p64 = por %p62, %p63
    %p65 = scmp.ne.s32.totalorder %s57, %s59
    %p66 = scmp.eq.s32.totalorder %s14, 1
    %p67 = por %p65, %p66
    %p68 = scmp.ne.s32.totalorder %s59, %s60
    %p69 = scmp.eq.s32.totalorder %s14, 0
    %p70 = por %p68, %p69
    %p71 = scmp.ne.s32.totalorder %s59, %s60
    %p72 = scmp.eq.s32.totalorder %s15, 1
    %p73 = por %p71, %p72
    %p75 = scmp.ne.s32.totalorder %s60, %s74
    %p76 = scmp.eq.s32.totalorder %s15, 0
    %p77 = por %p75, %p76
    %s79 = sadd.s32 %s78, 1
    %p82 = scmp.eq.s32.totalorder %s9, 1
    %p83 = scmp.ne.s32.totalorder %s78, %s80
    %p84 = scmp.eq.s32.totalorder %s9, 0
    %p85 = por %p83, %p84
    %p86 = scmp.ne.s32.totalorder %s78, %s80
    %p87 = scmp.eq.s32.totalorder %s14, 1
    %p88 = por %p86, %p87
    %p89 = scmp.ne.s32.totalorder %s80, %s81
    %p90 = scmp.eq.s32.totalorder %s14, 0
    %p91 = por %p89, %p90
    %p92 = scmp.ne.s32.totalorder %s80, %s81
    %p93 = scmp.eq.s32.totalorder %s15, 1
    %p94 = por %p92, %p93
    %p96 = scmp.ne.s32.totalorder %s81, %s95
    %p97 = scmp.eq.s32.totalorder %s15, 0
    %p98 = por %p96, %p97
    %s99 = ssub.s32 %s17, %s24
    %s100 = ssub.s32 %s16, %s28
    %s101 = sor.u32 %s99, %s100
    %p102 = scmp.eq.s32.totalorder %s101, 0
    %s104 = sadd.s32 %s103, 1
    %s105 = scalar_select %p102, %s103, %s104
    %p108 = pneg %p102
    %p109 = scmp.eq.s32.totalorder %s9, 1
    %p110 = por %p108, %p109
    %p111 = scmp.ne.s32.totalorder %s103, %s106
    %p112 = scmp.eq.s32.totalorder %s9, 0
    %p113 = por %p111, %p112
    %p114 = scmp.ne.s32.totalorder %s103, %s106
    %p115 = scmp.eq.s32.totalorder %s14, 1
    %p116 = por %p114, %p115
    %p117 = scmp.ne.s32.totalorder %s106, %s107
    %p118 = scmp.eq.s32.totalorder %s14, 0
    %p119 = por %p117, %p118
    %p120 = scmp.ne.s32.totalorder %s106, %s107
    %p121 = scmp.eq.s32.totalorder %s15, 1
    %p122 = por %p120, %p121
    %p124 = scmp.ne.s32.totalorder %s107, %s123
    %p125 = scmp.eq.s32.totalorder %s15, 0
    %p126 = por %p124, %p125
    %p127 = scmp.le.s32.totalorder 1, %s9
    %p128 = scmp.lt.s32.totalorder %s9, 3
    %p129 = pnand %p127, %p128
    %p130 = pneg %p129
    // Predicated region
    $region9: #{gru_forward.1} parent=5 // pred_check
      _
    $region10: #{gru_forward.1} parent=5 // pred_check_branch
      %132 = sbr.rel (%p129) target = $region12
    $region11: #{gru_forward.1} parent=5 // pred_region
      %s133 = ssub.s32 %s9, 1
      // Predicated region
      $region13: #{gru_forward.1} parent=11 // pred_check
        %p134 = pneg %p70
      $region14: #{gru_forward.1} parent=11 // pred_check_branch
        %136 = sbr.rel (%p134) target = $region16
      $region15: #{gru_forward.1} parent=11 // pred_region
        _
      $region16: #{gru_forward.1} parent=11 // pred_fallthru
        _
      // Predicated region
      $region17: #{gru_forward.1} parent=11 // pred_check
        %p137 = pneg %p91
      $region18: #{gru_forward.1} parent=11 // pred_check_branch
        %139 = sbr.rel (%p137) target = $region20
      $region19: #{gru_forward.1} parent=11 // pred_region
        _
      $region20: #{gru_forward.1} parent=11 // pred_fallthru
        _
    $region12: #{gru_forward.1} parent=5 // pred_fallthru
      _
    %p140 = scmp.lt.s32.totalorder %s9, 2
    // Predicated region
    $region21: #{gru_forward.1} parent=5 // pred_check
      %p141 = pneg %p140
    $region22: #{gru_forward.1} parent=5 // pred_check_branch
      %143 = sbr.rel (%p141) target = $region24
    $region23: #{gru_forward.1} parent=5 // pred_region
      // Predicated region
      $region25: #{gru_forward.1} parent=23 // pred_check
        %p144 = pneg %p43
      $region26: #{gru_forward.1} parent=23 // pred_check_branch
        %146 = sbr.rel (%p144) target = $region28
      $region27: #{gru_forward.1} parent=23 // pred_region
        %s147 = smul.u32 4, %s17
        %p148 = scmp.lt.s32.totalorder %s147, 7
        %s149 = scalar_select %p148, %s147, 7
        %p150 = scmp.lt.s32.totalorder %s16, 0
        %s151 = scalar_select %p150, %s16, 0
        %s152 = smul.addr %s151, 3
        %s153 = smul.addr %s149, 3
        %s154 = sadd.s32 %s152, %s153
        %s155 = smul.addr %s154, 4
        %s156 = scalar_lea.vmem %s0, %s155
        %s157 = smul.u32 4, %s17
      $region28: #{gru_forward.1} parent=23 // pred_fallthru
        _
    $region24: #{gru_forward.1} parent=5 // pred_fallthru
      _
    %p158 = scmp.le.s32.totalorder 1, %s9
    %p159 = scmp.lt.s32.totalorder %s9, 3
    %p160 = pnand %p158, %p159
    %p161 = pneg %p160
    // Predicated region
    $region29: #{gru_forward.1} parent=5 // pred_check
      _
    $region30: #{gru_forward.1} parent=5 // pred_check_branch
      %163 = sbr.rel (%p160) target = $region32
    $region31: #{gru_forward.1} parent=5 // pred_region
      %s164 = ssub.s32 %s9, 1
      %s165 = smul.u32 4, %s19
      %p166 = scmp.lt.s32.totalorder %s165, 7
      %s167 = scalar_select %p166, %s165, 7
      %p168 = scmp.lt.s32.totalorder %s18, 0
      %s169 = scalar_select %p168, %s18, 0
      %s170 = smul.addr %s169, 3
      %s171 = smul.addr %s167, 3
      %s172 = sadd.s32 %s170, %s171
      %s173 = smul.addr %s172, 4
      %s174 = scalar_lea.vmem %s0, %s173
      %p175 = pneg %p49
      %p176 = pneg %p46
      %p177 = pneg %p70
      %p178 = pneg %p67
      %p179 = pneg %p91
      %p180 = pneg %p88
      %p181 = pneg %p119
      %p182 = pneg %p116
      %s183 = smul.u32 4, %s19
      %p184 = scmp.lt.s32.totalorder %s183, 7
      %s185 = scalar_select %p184, %s183, 7
      %p186 = scmp.lt.s32.totalorder %s18, 0
      %s187 = scalar_select %p186, %s18, 0
      %s188 = sadd.s32 %s187, %s185
      %s189 = smul.addr %s188, 8
      %s190 = scalar_lea.vmem %s3, %s189
      %s191 = smul.u32 4, %s19
      %p192 = scmp.lt.s32.totalorder %s191, 7
      %s193 = scalar_select %p192, %s191, 7
      %p194 = scmp.lt.s32.totalorder %s18, 0
      %s195 = scalar_select %p194, %s18, 0
      %s196 = smul.addr %s195, 3
      %s197 = smul.addr %s193, 3
      %s198 = sadd.s32 %s196, %s197
      %s199 = smul.addr %s198, 4
      %s200 = scalar_lea.vmem %s0, %s199
      %s201 = smul.u32 4, %s19
      %s202 = smul.u32 4, %s19
      %p203 = scmp.lt.s32.totalorder %s202, 7
      %s204 = scalar_select %p203, %s202, 7
      %p205 = scmp.lt.s32.totalorder %s18, 0
      %s206 = scalar_select %p205, %s18, 0
      %s207 = sadd.s32 %s206, %s204
      %s208 = smul.addr %s207, 8
      %s209 = scalar_lea.vmem %s3, %s208
      %s210 = smul.u32 4, %s19
      %p212 = scmp.eq.s32.totalorder %s19, 0
      // Predicated region
      $region33: #{gru_forward.1} parent=31 // pred_check
        %p213 = pneg %p212
      $region34: #{gru_forward.1} parent=31 // pred_check_branch
        %215 = sbr.rel (%p213) target = $region36
      $region35: #{gru_forward.1} parent=31 // pred_region
        %216 = vst [vmem:[#allocation2] sm:$0xff] 0.0
      $region36: #{gru_forward.1} parent=31 // pred_fallthru
        _
      %v217 = vld [vmem:[%s1] sm:$0xff]
      %v218 = vld [vmem:[%s1 + $0x8] sm:$0xf]
      %v219 = vld [vmem:[%s1 + $0xc] sm:$0xff]
      %v220 = vld [vmem:[%s1 + $0x14] sm:$0xf]
      %v221 = vld [vmem:[%s1 + $0x18] sm:$0xff]
      %v222 = vld [vmem:[%s1 + $0x20] sm:$0xf]
      %v223 = vld [vmem:[%s1 + $0x24] sm:$0xff]
      %v224 = vld [vmem:[%s1 + $0x2c] sm:$0xf]
      %v225 = vld [vmem:[%s1 + $0x30] sm:$0xff]
      %v226 = vld [vmem:[%s1 + $0x38] sm:$0xf]
      %v227 = vld [vmem:[%s1 + $0x3c] sm:$0xff]
      %v228 = vld [vmem:[%s1 + $0x44] sm:$0xf]
      %v229 = vld [vmem:[%s1 + $0x48] sm:$0xff]
      %v230 = vld [vmem:[%s1 + $0x50] sm:$0xf]
      %v231 = vld [vmem:[%s1 + $0x54] sm:$0xff]
      %v232 = vld [vmem:[%s1 + $0x5c] sm:$0xf]
      %v233 = vld [vmem:[%s1 + $0x60] sm:$0xff]
      %v234 = vld [vmem:[%s1 + $0x68] sm:$0xf]
      %v235 = vld [vmem:[%s1 + $0x6c] sm:$0xff]
      %v236 = vld [vmem:[%s1 + $0x74] sm:$0xf]
      %v237 = vld [vmem:[%s1 + $0x78] sm:$0xff]
      %v238 = vld [vmem:[%s1 + $0x80] sm:$0xf]
      %v239 = vld [vmem:[%s1 + $0x84] sm:$0xff]
      %v240 = vld [vmem:[%s1 + $0x8c] sm:$0xf]
      %v241 = vld [vmem:[%s1 + $0x90] sm:$0xff]
      %v242 = vld [vmem:[%s1 + $0x98] sm:$0xf]
      %v243 = vld [vmem:[%s1 + $0x9c] sm:$0xff]
      %v244 = vld [vmem:[%s1 + $0xa4] sm:$0xf]
      %v245 = vld [vmem:[%s1 + $0xa8] sm:$0xff]
      %v246 = vld [vmem:[%s1 + $0xb0] sm:$0xf]
      %v247 = vld [vmem:[%s1 + $0xb4] sm:$0xff]
      %v248 = vld [vmem:[%s1 + $0xbc] sm:$0xf]
      %v249 = vld [vmem:[%s2] sm:$0x1]
      %v250 = vld [vmem:[#allocation2] sm:$0xff]
      %v251 = vld [vmem:[%s200] sm:$0xff]
      %v252 = vld [vmem:[%s200 + $0x8] sm:$0xf]
      %v253 = vunpack.c.l.bf16 %v251
      %v254 = vunpack.c.h.bf16 %v251
      %v255 = vunpack.c.l.bf16 %v252
      %v256 = vpack.c.bf16 %v250, %v250
      %v289 = vunpack.c.l.b16 %v217
      %v290 = vunpack.c.h.b16 %v217
      %v291 = vunpack.c.l.b16 %v218
      %v292 = vunpack.c.l.b16 %v219
      %v293 = vunpack.c.h.b16 %v219
      %v294 = vunpack.c.l.b16 %v220
      %v295 = vunpack.c.l.b16 %v221
      %v296 = vunpack.c.h.b16 %v221
      %v297 = vunpack.c.l.b16 %v222
      %v298 = vunpack.c.l.b16 %v223
      %v299 = vunpack.c.h.b16 %v223
      %v300 = vunpack.c.l.b16 %v224
      %v301 = vunpack.c.l.b16 %v225
      %v302 = vunpack.c.h.b16 %v225
      %v303 = vunpack.c.l.b16 %v226
      %v304 = vunpack.c.l.b16 %v227
      %v305 = vunpack.c.h.b16 %v227
      %v306 = vunpack.c.l.b16 %v228
      %v307 = vunpack.c.l.b16 %v229
      %v308 = vunpack.c.h.b16 %v229
      %v309 = vunpack.c.l.b16 %v230
      %v310 = vunpack.c.l.b16 %v231
      %v311 = vunpack.c.h.b16 %v231
      %v312 = vunpack.c.l.b16 %v232
      %v313 = vunpack.c.l.b16 %v233
      %v314 = vunpack.c.h.b16 %v233
      %v315 = vunpack.c.l.b16 %v234
      %v316 = vunpack.c.l.b16 %v235
      %v317 = vunpack.c.h.b16 %v235
      %v318 = vunpack.c.l.b16 %v236
      %v319 = vunpack.c.l.b16 %v237
      %v320 = vunpack.c.h.b16 %v237
      %v321 = vunpack.c.l.b16 %v238
      %v322 = vunpack.c.l.b16 %v239
      %v323 = vunpack.c.h.b16 %v239
      %v324 = vunpack.c.l.b16 %v240
      %v325 = vunpack.c.l.b16 %v241
      %v326 = vunpack.c.h.b16 %v241
      %v327 = vunpack.c.l.b16 %v242
      %v328 = vunpack.c.l.b16 %v243
      %v329 = vunpack.c.h.b16 %v243
      %v330 = vunpack.c.l.b16 %v244
      %v331 = vunpack.c.l.b16 %v245
      %v332 = vunpack.c.h.b16 %v245
      %v333 = vunpack.c.l.b16 %v246
      %v334 = vunpack.c.l.b16 %v247
      %v335 = vunpack.c.h.b16 %v247
      %v336 = vunpack.c.l.b16 %v248
      %v337 = vpack.c.b16 %v292, %v289
      %v338 = vpack.c.b16 %v293, %v290
      %v339 = vpack.c.b16 %v294, %v291
      %v340 = vpack.c.b16 %v298, %v295
      %v341 = vpack.c.b16 %v299, %v296
      %v342 = vpack.c.b16 %v300, %v297
      %v343 = vpack.c.b16 %v304, %v301
      %v344 = vpack.c.b16 %v305, %v302
      %v345 = vpack.c.b16 %v306, %v303
      %v346 = vpack.c.b16 %v310, %v307
      %v347 = vpack.c.b16 %v311, %v308
      %v348 = vpack.c.b16 %v312, %v309
      %v349 = vpack.c.b16 %v316, %v313
      %v350 = vpack.c.b16 %v317, %v314
      %v351 = vpack.c.b16 %v318, %v315
      %v352 = vpack.c.b16 %v322, %v319
      %v353 = vpack.c.b16 %v323, %v320
      %v354 = vpack.c.b16 %v324, %v321
      %v355 = vpack.c.b16 %v328, %v325
      %v356 = vpack.c.b16 %v329, %v326
      %v357 = vpack.c.b16 %v330, %v327
      %v358 = vpack.c.b16 %v334, %v331
      %v359 = vpack.c.b16 %v335, %v332
      %v360 = vpack.c.b16 %v336, %v333
      %385 = vmatprep.subr.bf16.mxu0 %v338
      %386 = vmatpush1.bf16.msra.mxu0 %v337
      %387 = vmatprep.subr.bf16.mxu0 %v341
      %388 = vmatpush1.bf16.msra.mxu0 %v340
      %389 = vmatprep.subr.bf16.mxu0 %v344
      %390 = vmatpush1.bf16.msra.mxu0 %v343
      %391 = vmatprep.subr.bf16.mxu0 %v347
      %392 = vmatpush1.bf16.msra.mxu0 %v346
      %393 = vmatprep.subr.bf16.mxu0 %v350
      %394 = vmatpush1.bf16.msra.mxu0 %v349
      %395 = vmatprep.subr.bf16.mxu0 %v353
      %396 = vmatpush1.bf16.msra.mxu0 %v352
      %397 = vmatprep.subr.bf16.mxu0 %v356
      %398 = vmatpush1.bf16.msra.mxu0 %v355
      %399 = vmatprep.subr.bf16.mxu0 %v359
      %400 = vmatpush1.bf16.msra.mxu0 %v358
      %401 = vmatprep.subr.bf16.mxu0 0
      %402 = vmatpush1.bf16.msra.mxu0 0
      %403 = vmatprep.subr.bf16.mxu0 0
      %404 = vmatpush1.bf16.msra.mxu0 0
      %405 = vmatprep.subr.bf16.mxu0 0
      %406 = vmatpush1.bf16.msra.mxu0 0
      %407 = vmatprep.subr.bf16.mxu0 0
      %408 = vmatpush1.bf16.msra.mxu0 0
      %409 = vmatprep.subr.bf16.mxu0 0
      %410 = vmatpush1.bf16.msra.mxu0 0
      %411 = vmatprep.subr.bf16.mxu0 0
      %412 = vmatpush1.bf16.msra.mxu0 0
      %413 = vmatprep.subr.bf16.mxu0 0
      %414 = vmatpush1.bf16.msra.mxu0 0
      %415 = vmatprep.subr.bf16.mxu0 0
      %416 = vmatpush1.bf16.msra.mxu0 0
      %417 = vmatprep.mubr.bf16.mxu0 0
      %418 = vmatmul.mubr.bf16.gmra.mrb[0].mxu0 %v256
      %v419 = vpop.f32.mrb[0].mxu0
      %v420 = vadd.f32 0.0, %v419
      %v421 = vpop.f32.mrb[0].mxu0
      %v422 = vadd.f32 0.0, %v421
      %v423 = vpop.f32.mrb[0].mxu0
      %v424 = vpop.f32.mrb[0].mxu0
      %425 = vdwg.mxu0
      %426 = vmatprep.subr.bf16.mxu0 0
      %427 = vmatpush1.bf16.msra.mxu0 %v339
      %428 = vmatprep.subr.bf16.mxu0 0
      %429 = vmatpush1.bf16.msra.mxu0 %v342
      %430 = vmatprep.subr.bf16.mxu0 0
      %431 = vmatpush1.bf16.msra.mxu0 %v345
      %432 = vmatprep.subr.bf16.mxu0 0
      %433 = vmatpush1.bf16.msra.mxu0 %v348
      %434 = vmatprep.subr.bf16.mxu0 0
      %435 = vmatpush1.bf16.msra.mxu0 %v351
      %436 = vmatprep.subr.bf16.mxu0 0
      %437 = vmatpush1.bf16.msra.mxu0 %v354
      %438 = vmatprep.subr.bf16.mxu0 0
      %439 = vmatpush1.bf16.msra.mxu0 %v357
      %440 = vmatprep.subr.bf16.mxu0 0
      %441 = vmatpush1.bf16.msra.mxu0 %v360
      %442 = vmatprep.subr.bf16.mxu0 0
      %443 = vmatpush1.bf16.msra.mxu0 0
      %444 = vmatprep.subr.bf16.mxu0 0
      %445 = vmatpush1.bf16.msra.mxu0 0
      %446 = vmatprep.subr.bf16.mxu0 0
      %447 = vmatpush1.bf16.msra.mxu0 0
      %448 = vmatprep.subr.bf16.mxu0 0
      %449 = vmatpush1.bf16.msra.mxu0 0
      %450 = vmatprep.subr.bf16.mxu0 0
      %451 = vmatpush1.bf16.msra.mxu0 0
      %452 = vmatprep.subr.bf16.mxu0 0
      %453 = vmatpush1.bf16.msra.mxu0 0
      %454 = vmatprep.subr.bf16.mxu0 0
      %455 = vmatpush1.bf16.msra.mxu0 0
      %456 = vmatprep.subr.bf16.mxu0 0
      %457 = vmatpush1.bf16.msra.mxu0 0
      %458 = vmatprep.mubr.bf16.mxu0 0
      %459 = vmatmul.mubr.bf16.gmra.mrb[0].mxu0 %v256
      %v460 = vpop.f32.mrb[0].mxu0
      %v461 = vadd.f32 0.0, %v460
      %v462 = vpop.f32.mrb[0].mxu0
      %v463 = vpop.f32.mrb[0].mxu0
      %v464 = vpop.f32.mrb[0].mxu0
      %465 = vdwg.mxu0
      %v466 = vadd.f32 %v253, %v420
      %v467 = vxor.u32 %v466, 2147483648
      %v468 = vmul.f32 %v467, 1.442695
      %v469 = vpow.pop %v468
      %v470 = vadd.f32 %v469, 1.0
      %v471 = vrcp.pop %v470
      %v472 = vmul.f32 1.0, %v471
      %v473 = vadd.f32 %v254, %v422
      %v474 = vxor.u32 %v473, 2147483648
      %v475 = vmul.f32 %v474, 1.442695
      %v476 = vpow.pop %v475
      %v477 = vadd.f32 %v476, 1.0
      %v478 = vrcp.pop %v477
      %v479 = vmul.f32 1.0, %v478
      %v481 = vlaneseq
      %v482 = vshrl.u32 %v481, 7
      %v483 = vsub.s32 0, %v482
      %v484 = vrot.slane %v249, %v483
      %v486 = vadd.f32 %v461, %v484
      %v487 = vmul.f32 %v472, %v486
      %v488 = vadd.f32 %v255, %v487
      %v489 = vtanh.pop %v488
      %v490 = vsub.f32 %v250, %v489
      %v491 = vmul.f32 %v479, %v490
      %v492 = vadd.f32 %v489, %v491
      %493 = vst [vmem:[%s209] sm:$0xff] %v492
      %s494 = scalar_lea.vmem %s200, 12
      %v495 = vld [vmem:[%s494] sm:$0xff]
      %v496 = vld [vmem:[%s494 + $0x8] sm:$0xf]
      %v497 = vunpack.c.l.bf16 %v495
      %v498 = vunpack.c.h.bf16 %v495
      %v499 = vunpack.c.l.bf16 %v496
      %v500 = vpack.c.bf16 %v492, %v492
      %501 = vmatprep.subr.bf16.mxu0 %v338
      %502 = vmatpush1.bf16.msra.mxu0 %v337
      %503 = vmatprep.subr.bf16.mxu0 %v341
      %504 = vmatpush1.bf16.msra.mxu0 %v340
      %505 = vmatprep.subr.bf16.mxu0 %v344
      %506 = vmatpush1.bf16.msra.mxu0 %v343
      %507 = vmatprep.subr.bf16.mxu0 %v347
      %508 = vmatpush1.bf16.msra.mxu0 %v346
      %509 = vmatprep.subr.bf16.mxu0 %v350
      %510 = vmatpush1.bf16.msra.mxu0 %v349
      %511 = vmatprep.subr.bf16.mxu0 %v353
      %512 = vmatpush1.bf16.msra.mxu0 %v352
      %513 = vmatprep.subr.bf16.mxu0 %v356
      %514 = vmatpush1.bf16.msra.mxu0 %v355
      %515 = vmatprep.subr.bf16.mxu0 %v359
      %516 = vmatpush1.bf16.msra.mxu0 %v358
      %517 = vmatprep.subr.bf16.mxu0 0
      %518 = vmatpush1.bf16.msra.mxu0 0
      %519 = vmatprep.subr.bf16.mxu0 0
      %520 = vmatpush1.bf16.msra.mxu0 0
      %521 = vmatprep.subr.bf16.mxu0 0
      %522 = vmatpush1.bf16.msra.mxu0 0
      %523 = vmatprep.subr.bf16.mxu0 0
      %524 = vmatpush1.bf16.msra.mxu0 0
      %525 = vmatprep.subr.bf16.mxu0 0
      %526 = vmatpush1.bf16.msra.mxu0 0
      %527 = vmatprep.subr.bf16.mxu0 0
      %528 = vmatpush1.bf16.msra.mxu0 0
      %529 = vmatprep.subr.bf16.mxu0 0
      %530 = vmatpush1.bf16.msra.mxu0 0
      %531 = vmatprep.subr.bf16.mxu0 0
      %532 = vmatpush1.bf16.msra.mxu0 0
      %533 = vmatprep.mubr.bf16.mxu0 0
      %534 = vmatmul.mubr.bf16.gmra.mrb[0].mxu0 %v500
      %v535 = vpop.f32.mrb[0].mxu0
      %v536 = vadd.f32 0.0, %v535
      %v537 = vpop.f32.mrb[0].mxu0
      %v538 = vadd.f32 0.0, %v537
      %v539 = vpop.f32.mrb[0].mxu0
      %v540 = vpop.f32.mrb[0].mxu0
      %541 = vdwg.mxu0
      %542 = vmatprep.subr.bf16.mxu0 0
      %543 = vmatpush1.bf16.msra.mxu0 %v339
      %544 = vmatprep.subr.bf16.mxu0 0
      %545 = vmatpush1.bf16.msra.mxu0 %v342
      %546 = vmatprep.subr.bf16.mxu0 0
      %547 = vmatpush1.bf16.msra.mxu0 %v345
      %548 = vmatprep.subr.bf16.mxu0 0
      %549 = vmatpush1.bf16.msra.mxu0 %v348
      %550 = vmatprep.subr.bf16.mxu0 0
      %551 = vmatpush1.bf16.msra.mxu0 %v351
      %552 = vmatprep.subr.bf16.mxu0 0
      %553 = vmatpush1.bf16.msra.mxu0 %v354
      %554 = vmatprep.subr.bf16.mxu0 0
      %555 = vmatpush1.bf16.msra.mxu0 %v357
      %556 = vmatprep.subr.bf16.mxu0 0
      %557 = vmatpush1.bf16.msra.mxu0 %v360
      %558 = vmatprep.subr.bf16.mxu0 0
      %559 = vmatpush1.bf16.msra.mxu0 0
      %560 = vmatprep.subr.bf16.mxu0 0
      %561 = vmatpush1.bf16.msra.mxu0 0
      %562 = vmatprep.subr.bf16.mxu0 0
      %563 = vmatpush1.bf16.msra.mxu0 0
      %564 = vmatprep.subr.bf16.mxu0 0
      %565 = vmatpush1.bf16.msra.mxu0 0
      %566 = vmatprep.subr.bf16.mxu0 0
      %567 = vmatpush1.bf16.msra.mxu0 0
      %568 = vmatprep.subr.bf16.mxu0 0
      %569 = vmatpush1.bf16.msra.mxu0 0
      %570 = vmatprep.subr.bf16.mxu0 0
      %571 = vmatpush1.bf16.msra.mxu0 0
      %572 = vmatprep.subr.bf16.mxu0 0
      %573 = vmatpush1.bf16.msra.mxu0 0
      %574 = vmatprep.mubr.bf16.mxu0 0
      %575 = vmatmul.mubr.bf16.gmra.mrb[0].mxu0 %v500
      %v576 = vpop.f32.mrb[0].mxu0
      %v577 = vadd.f32 0.0, %v576
      %v578 = vpop.f32.mrb[0].mxu0
      %v579 = vpop.f32.mrb[0].mxu0
      %v580 = vpop.f32.mrb[0].mxu0
      %581 = vdwg.mxu0
      %v582 = vadd.f32 %v497, %v536
      %v583 = vxor.u32 %v582, 2147483648
      %v584 = vmul.f32 %v583, 1.442695
      %v585 = vpow.pop %v584
      %v586 = vadd.f32 %v585, 1.0
      %v587 = vrcp.pop %v586
      %v588 = vmul.f32 1.0, %v587
      %v589 = vadd.f32 %v498, %v538
      %v590 = vxor.u32 %v589, 2147483648
      %v591 = vmul.f32 %v590, 1.442695
      %v592 = vpow.pop %v591
      %v593 = vadd.f32 %v592, 1.0
      %v594 = vrcp.pop %v593
      %v595 = vmul.f32 1.0, %v594
      %v596 = vadd.f32 %v577, %v484
      %v597 = vmul.f32 %v588, %v596
      %v598 = vadd.f32 %v499, %v597
      %v599 = vtanh.pop %v598
      %v600 = vsub.f32 %v492, %v599
      %v601 = vmul.f32 %v595, %v600
      %v602 = vadd.f32 %v599, %v601
      %s603 = scalar_lea.vmem %s209, 8
      %604 = vst [vmem:[%s603] sm:$0xff] %v602
      %s605 = scalar_lea.vmem %s200, 24
      %v606 = vld [vmem:[%s605] sm:$0xff]
      %v607 = vld [vmem:[%s605 + $0x8] sm:$0xf]
      %v608 = vunpack.c.l.bf16 %v606
      %v609 = vunpack.c.h.bf16 %v606
      %v610 = vunpack.c.l.bf16 %v607
      %v611 = vpack.c.bf16 %v602, %v602
      %612 = vmatprep.subr.bf16.mxu0 %v338
      %613 = vmatpush1.bf16.msra.mxu0 %v337
      %614 = vmatprep.subr.bf16.mxu0 %v341
      %615 = vmatpush1.bf16.msra.mxu0 %v340
      %616 = vmatprep.subr.bf16.mxu0 %v344
      %617 = vmatpush1.bf16.msra.mxu0 %v343
      %618 = vmatprep.subr.bf16.mxu0 %v347
      %619 = vmatpush1.bf16.msra.mxu0 %v346
      %620 = vmatprep.subr.bf16.mxu0 %v350
      %621 = vmatpush1.bf16.msra.mxu0 %v349
      %622 = vmatprep.subr.bf16.mxu0 %v353
      %623 = vmatpush1.bf16.msra.mxu0 %v352
      %624 = vmatprep.subr.bf16.mxu0 %v356
      %625 = vmatpush1.bf16.msra.mxu0 %v355
      %626 = vmatprep.subr.bf16.mxu0 %v359
      %627 = vmatpush1.bf16.msra.mxu0 %v358
      %628 = vmatprep.subr.bf16.mxu0 0
      %629 = vmatpush1.bf16.msra.mxu0 0
      %630 = vmatprep.subr.bf16.mxu0 0
      %631 = vmatpush1.bf16.msra.mxu0 0
      %632 = vmatprep.subr.bf16.mxu0 0
      %633 = vmatpush1.bf16.msra.mxu0 0
      %634 = vmatprep.subr.bf16.mxu0 0
      %635 = vmatpush1.bf16.msra.mxu0 0
      %636 = vmatprep.subr.bf16.mxu0 0
      %637 = vmatpush1.bf16.msra.mxu0 0
      %638 = vmatprep.subr.bf16.mxu0 0
      %639 = vmatpush1.bf16.msra.mxu0 0
      %640 = vmatprep.subr.bf16.mxu0 0
      %641 = vmatpush1.bf16.msra.mxu0 0
      %642 = vmatprep.subr.bf16.mxu0 0
      %643 = vmatpush1.bf16.msra.mxu0 0
      %644 = vmatprep.mubr.bf16.mxu0 0
      %645 = vmatmul.mubr.bf16.gmra.mrb[0].mxu0 %v611
      %v646 = vpop.f32.mrb[0].mxu0
      %v647 = vadd.f32 0.0, %v646
      %v648 = vpop.f32.mrb[0].mxu0
      %v649 = vadd.f32 0.0, %v648
      %v650 = vpop.f32.mrb[0].mxu0
      %v651 = vpop.f32.mrb[0].mxu0
      %652 = vdwg.mxu0
      %653 = vmatprep.subr.bf16.mxu0 0
      %654 = vmatpush1.bf16.msra.mxu0 %v339
      %655 = vmatprep.subr.bf16.mxu0 0
      %656 = vmatpush1.bf16.msra.mxu0 %v342
      %657 = vmatprep.subr.bf16.mxu0 0
      %658 = vmatpush1.bf16.msra.mxu0 %v345
      %659 = vmatprep.subr.bf16.mxu0 0
      %660 = vmatpush1.bf16.msra.mxu0 %v348
      %661 = vmatprep.subr.bf16.mxu0 0
      %662 = vmatpush1.bf16.msra.mxu0 %v351
      %663 = vmatprep.subr.bf16.mxu0 0
      %664 = vmatpush1.bf16.msra.mxu0 %v354
      %665 = vmatprep.subr.bf16.mxu0 0
      %666 = vmatpush1.bf16.msra.mxu0 %v357
      %667 = vmatprep.subr.bf16.mxu0 0
      %668 = vmatpush1.bf16.msra.mxu0 %v360
      %669 = vmatprep.subr.bf16.mxu0 0
      %670 = vmatpush1.bf16.msra.mxu0 0
      %671 = vmatprep.subr.bf16.mxu0 0
      %672 = vmatpush1.bf16.msra.mxu0 0
      %673 = vmatprep.subr.bf16.mxu0 0
      %674 = vmatpush1.bf16.msra.mxu0 0
      %675 = vmatprep.subr.bf16.mxu0 0
      %676 = vmatpush1.bf16.msra.mxu0 0
      %677 = vmatprep.subr.bf16.mxu0 0
      %678 = vmatpush1.bf16.msra.mxu0 0
      %679 = vmatprep.subr.bf16.mxu0 0
      %680 = vmatpush1.bf16.msra.mxu0 0
      %681 = vmatprep.subr.bf16.mxu0 0
      %682 = vmatpush1.bf16.msra.mxu0 0
      %683 = vmatprep.subr.bf16.mxu0 0
      %684 = vmatpush1.bf16.msra.mxu0 0
      %685 = vmatprep.mubr.bf16.mxu0 0
      %686 = vmatmul.mubr.bf16.gmra.mrb[0].mxu0 %v611
      %v687 = vpop.f32.mrb[0].mxu0
      %v688 = vadd.f32 0.0, %v687
      %v689 = vpop.f32.mrb[0].mxu0
      %v690 = vpop.f32.mrb[0].mxu0
      %v691 = vpop.f32.mrb[0].mxu0
      %692 = vdwg.mxu0
      %v693 = vadd.f32 %v608, %v647
      %v694 = vxor.u32 %v693, 2147483648
      %v695 = vmul.f32 %v694, 1.442695
      %v696 = vpow.pop %v695
      %v697 = vadd.f32 %v696, 1.0
      %v698 = vrcp.pop %v697
      %v699 = vmul.f32 1.0, %v698
      %v700 = vadd.f32 %v609, %v649
      %v701 = vxor.u32 %v700, 2147483648
      %v702 = vmul.f32 %v701, 1.442695
      %v703 = vpow.pop %v702
      %v704 = vadd.f32 %v703, 1.0
      %v705 = vrcp.pop %v704
      %v706 = vmul.f32 1.0, %v705
      %v707 = vadd.f32 %v688, %v484
      %v708 = vmul.f32 %v699, %v707
      %v709 = vadd.f32 %v610, %v708
      %v710 = vtanh.pop %v709
      %v711 = vsub.f32 %v602, %v710
      %v712 = vmul.f32 %v706, %v711
      %v713 = vadd.f32 %v710, %v712
      %s714 = scalar_lea.vmem %s209, 16
      %715 = vst [vmem:[%s714] sm:$0xff] %v713
      %s716 = scalar_lea.vmem %s200, 36
      %v717 = vld [vmem:[%s716] sm:$0xff]
      %v718 = vld [vmem:[%s716 + $0x8] sm:$0xf]
      %v719 = vunpack.c.l.bf16 %v717
      %v720 = vunpack.c.h.bf16 %v717
      %v721 = vunpack.c.l.bf16 %v718
      %v722 = vpack.c.bf16 %v713, %v713
      %723 = vmatprep.subr.bf16.mxu0 %v338
      %724 = vmatpush1.bf16.msra.mxu0 %v337
      %725 = vmatprep.subr.bf16.mxu0 %v341
      %726 = vmatpush1.bf16.msra.mxu0 %v340
      %727 = vmatprep.subr.bf16.mxu0 %v344
      %728 = vmatpush1.bf16.msra.mxu0 %v343
      %729 = vmatprep.subr.bf16.mxu0 %v347
      %730 = vmatpush1.bf16.msra.mxu0 %v346
      %731 = vmatprep.subr.bf16.mxu0 %v350
      %732 = vmatpush1.bf16.msra.mxu0 %v349
      %733 = vmatprep.subr.bf16.mxu0 %v353
      %734 = vmatpush1.bf16.msra.mxu0 %v352
      %735 = vmatprep.subr.bf16.mxu0 %v356
      %736 = vmatpush1.bf16.msra.mxu0 %v355
      %737 = vmatprep.subr.bf16.mxu0 %v359
      %738 = vmatpush1.bf16.msra.mxu0 %v358
      %739 = vmatprep.subr.bf16.mxu0 0
      %740 = vmatpush1.bf16.msra.mxu0 0
      %741 = vmatprep.subr.bf16.mxu0 0
      %742 = vmatpush1.bf16.msra.mxu0 0
      %743 = vmatprep.subr.bf16.mxu0 0
      %744 = vmatpush1.bf16.msra.mxu0 0
      %745 = vmatprep.subr.bf16.mxu0 0
      %746 = vmatpush1.bf16.msra.mxu0 0
      %747 = vmatprep.subr.bf16.mxu0 0
      %748 = vmatpush1.bf16.msra.mxu0 0
      %749 = vmatprep.subr.bf16.mxu0 0
      %750 = vmatpush1.bf16.msra.mxu0 0
      %751 = vmatprep.subr.bf16.mxu0 0
      %752 = vmatpush1.bf16.msra.mxu0 0
      %753 = vmatprep.subr.bf16.mxu0 0
      %754 = vmatpush1.bf16.msra.mxu0 0
      %755 = vmatprep.mubr.bf16.mxu0 0
      %756 = vmatmul.mubr.bf16.gmra.mrb[0].mxu0 %v722
      %v757 = vpop.f32.mrb[0].mxu0
      %v758 = vadd.f32 0.0, %v757
      %v759 = vpop.f32.mrb[0].mxu0
      %v760 = vadd.f32 0.0, %v759
      %v761 = vpop.f32.mrb[0].mxu0
      %v762 = vpop.f32.mrb[0].mxu0
      %763 = vdwg.mxu0
      %764 = vmatprep.subr.bf16.mxu0 0
      %765 = vmatpush1.bf16.msra.mxu0 %v339
      %766 = vmatprep.subr.bf16.mxu0 0
      %767 = vmatpush1.bf16.msra.mxu0 %v342
      %768 = vmatprep.subr.bf16.mxu0 0
      %769 = vmatpush1.bf16.msra.mxu0 %v345
      %770 = vmatprep.subr.bf16.mxu0 0
      %771 = vmatpush1.bf16.msra.mxu0 %v348
      %772 = vmatprep.subr.bf16.mxu0 0
      %773 = vmatpush1.bf16.msra.mxu0 %v351
      %774 = vmatprep.subr.bf16.mxu0 0
      %775 = vmatpush1.bf16.msra.mxu0 %v354
      %776 = vmatprep.subr.bf16.mxu0 0
      %777 = vmatpush1.bf16.msra.mxu0 %v357
      %778 = vmatprep.subr.bf16.mxu0 0
      %779 = vmatpush1.bf16.msra.mxu0 %v360
      %780 = vmatprep.subr.bf16.mxu0 0
      %781 = vmatpush1.bf16.msra.mxu0 0
      %782 = vmatprep.subr.bf16.mxu0 0
      %783 = vmatpush1.bf16.msra.mxu0 0
      %784 = vmatprep.subr.bf16.mxu0 0
      %785 = vmatpush1.bf16.msra.mxu0 0
      %786 = vmatprep.subr.bf16.mxu0 0
      %787 = vmatpush1.bf16.msra.mxu0 0
      %788 = vmatprep.subr.bf16.mxu0 0
      %789 = vmatpush1.bf16.msra.mxu0 0
      %790 = vmatprep.subr.bf16.mxu0 0
      %791 = vmatpush1.bf16.msra.mxu0 0
      %792 = vmatprep.subr.bf16.mxu0 0
      %793 = vmatpush1.bf16.msra.mxu0 0
      %794 = vmatprep.subr.bf16.mxu0 0
      %795 = vmatpush1.bf16.msra.mxu0 0
      %796 = vmatprep.mubr.bf16.mxu0 0
      %797 = vmatmul.mubr.bf16.gmra.mrb[0].mxu0 %v722
      %v798 = vpop.f32.mrb[0].mxu0
      %v799 = vadd.f32 0.0, %v798
      %v800 = vpop.f32.mrb[0].mxu0
      %v801 = vpop.f32.mrb[0].mxu0
      %v802 = vpop.f32.mrb[0].mxu0
      %803 = vdwg.mxu0
      %v804 = vadd.f32 %v719, %v758
      %v805 = vxor.u32 %v804, 2147483648
      %v806 = vmul.f32 %v805, 1.442695
      %v807 = vpow.pop %v806
      %v808 = vadd.f32 %v807, 1.0
      %v809 = vrcp.pop %v808
      %v810 = vmul.f32 1.0, %v809
      %v811 = vadd.f32 %v720, %v760
      %v812 = vxor.u32 %v811, 2147483648
      %v813 = vmul.f32 %v812, 1.442695
      %v814 = vpow.pop %v813
      %v815 = vadd.f32 %v814, 1.0
      %v816 = vrcp.pop %v815
      %v817 = vmul.f32 1.0, %v816
      %v818 = vadd.f32 %v799, %v484
      %v819 = vmul.f32 %v810, %v818
      %v820 = vadd.f32 %v721, %v819
      %v821 = vtanh.pop %v820
      %v822 = vsub.f32 %v713, %v821
      %v823 = vmul.f32 %v817, %v822
      %v824 = vadd.f32 %v821, %v823
      %s825 = scalar_lea.vmem %s209, 24
      %826 = vst [vmem:[%s825] sm:$0xff] %v824
      %827 = vst [vmem:[#allocation2] sm:$0xff] %v824
      %s828 = smul.u32 4, %s19
      %p829 = scmp.lt.s32.totalorder %s828, 7
      %s830 = scalar_select %p829, %s828, 7
      %p831 = scmp.lt.s32.totalorder %s18, 0
      %s832 = scalar_select %p831, %s18, 0
      %s833 = sadd.s32 %s832, %s830
      %s834 = smul.addr %s833, 8
      %s835 = scalar_lea.vmem %s3, %s834
      // Predicated region
      $region37: #{gru_forward.1} parent=31 // pred_check
        %p836 = pneg %p116
      $region38: #{gru_forward.1} parent=31 // pred_check_branch
        %838 = sbr.rel (%p836) target = $region40
      $region39: #{gru_forward.1} parent=31 // pred_region
        %s839 = smul.u32 4, %s19
      $region40: #{gru_forward.1} parent=31 // pred_fallthru
        _
    $region32: #{gru_forward.1} parent=5 // pred_fallthru
      _
    %p840 = scmp.le.s32.totalorder 2, %s9
    // Predicated region
    $region41: #{gru_forward.1} parent=5 // pred_check
      %p841 = pneg %p840
    $region42: #{gru_forward.1} parent=5 // pred_check_branch
      %843 = sbr.rel (%p841) target = $region44
    $region43: #{gru_forward.1} parent=5 // pred_region
      %s844 = ssub.s32 %s9, 2
      // Predicated region
      $region45: #{gru_forward.1} parent=43 // pred_check
        %p845 = pneg %p122
      $region46: #{gru_forward.1} parent=43 // pred_check_branch
        %847 = sbr.rel (%p845) target = $region48
      $region47: #{gru_forward.1} parent=43 // pred_region
        %s848 = smul.u32 4, %s21
        %p849 = scmp.lt.s32.totalorder %s848, 7
        %s850 = scalar_select %p849, %s848, 7
        %p851 = scmp.lt.s32.totalorder %s20, 0
        %s852 = scalar_select %p851, %s20, 0
        %s853 = sadd.s32 %s852, %s850
        %s854 = smul.addr %s853, 8
        %s855 = scalar_lea.vmem %s3, %s854
      $region48: #{gru_forward.1} parent=43 // pred_fallthru
        _
    $region44: #{gru_forward.1} parent=5 // pred_fallthru
      _
  $region6: #{gru_forward.1} parent=0 // loop_footer
    %s13 = sadd.s32 1, %s9
  $region7: #{gru_forward.1} parent=0 // loop_footer_branch
    %8 = sbr.rel target = $region3
  $region8: #{gru_forward.1} parent=0 // loop_exit
    _

</llo_original>
